<compile_context>
chip_gen: v7x
topology: tpu7x:2x2x1
jax: 0.10.0
libtpu: 0.0.40
codegen_flags: <defaults>
</compile_context>

<pallas_src>
import functools

import jax
import jax.numpy as jnp
from jax.experimental import pallas as pl
from jax.experimental.pallas import tpu as pltpu

_LANE = 128     # vreg lane width
_SUBLANE = 8    # f32 sublanes per vreg


def _round_up(n, m):
    return (n + m - 1) // m * m


def _leaky_relu(x, slope=0.2):
    return jnp.where(x > 0, x, slope * x)


def _chip_caps():
    """Return (vmem_limit_bytes, max_batch_tile) for the local TPU generation."""
    try:
        kind = jax.devices()[0].device_kind.lower()
    except Exception:
        kind = ""
    if "v5" in kind or "v6" in kind:
        # 128 MiB physical VMEM: larger tiles amortize per-grid-step overhead.
        return 64 << 20, 2048
    # v7x (64 MiB physical per TensorCore) or unknown: stay conservative.
    return 40 << 20, 1024


def decoder_kernel(x_ref, w1_ref, b1_ref, w2_ref, b2_ref, w3_ref, b3_ref, out_ref):
    """One batch tile: three MXU matmuls (f32 accumulation) + VPU/EUP epilogue."""
    x = x_ref[...]

    # Layer 1: Linear(latent -> hidden) + LeakyReLU(0.2)
    h = jnp.dot(x, w1_ref[...], preferred_element_type=jnp.float32) + b1_ref[...]
    h = _leaky_relu(h)

    # Layer 2: Linear(hidden -> hidden) + LeakyReLU(0.2)
    h = jnp.dot(h, w2_ref[...], preferred_element_type=jnp.float32) + b2_ref[...]
    h = _leaky_relu(h)

    # Layer 3: Linear(hidden -> output) + sigmoid
    o = jnp.dot(h, w3_ref[...], preferred_element_type=jnp.float32) + b3_ref[...]
    out_ref[...] = jax.nn.sigmoid(o).astype(out_ref.dtype)


def prepare_decoder_params(w1, b1, w2, b2, w3, b3):
    """One-time (outside jit) zero-padding of the parameters.

    Only the output-feature dims are lane-padded to multiples of 128; the
    latent contraction dim is left untouched.  Padded columns are zero, so
    LeakyReLU(0) = 0 and the padding never leaks into downstream layers.
    """
    latent_dim, hidden_dim = w1.shape
    output_dim = w3.shape[1]
    hp = _round_up(hidden_dim, _LANE)
    op = _round_up(output_dim, _LANE)

    def pad2(a, rows, cols):
        return jnp.pad(a, ((0, rows - a.shape[0]), (0, cols - a.shape[1])))

    params = (
        pad2(w1, latent_dim, hp), pad2(b1.reshape(1, -1), 1, hp),
        pad2(w2, hp, hp),         pad2(b2.reshape(1, -1), 1, hp),
        pad2(w3, hp, op),         pad2(b3.reshape(1, -1), 1, op),
    )
    return params, output_dim


@functools.partial(jax.jit, static_argnames=("output_dim", "single_buffer_weights"))
def decoder_forward(x, params, *, output_dim, single_buffer_weights=True):
    w1, b1, w2, b2, w3, b3 = params
    batch, latent = x.shape
    hp = w1.shape[1]
    op = w3.shape[1]

    vmem_limit, tb_cap = _chip_caps()

    # Pad batch only to a sublane multiple (cheap); a ragged last tile is
    # handled by Pallas since the grid uses cdiv.
    bp = _round_up(batch, _SUBLANE)
    if bp != batch:
        x = jnp.pad(x, ((0, bp - batch), (0, 0)))

    # Batch tile: at least 2 grid steps when possible so both TensorCores on
    # v7x get work and x/out DMAs pipeline against compute.
    if bp <= _SUBLANE:
        tb = _SUBLANE
    elif bp <= tb_cap:
        tb = max(_SUBLANE, _round_up(-(-bp // 2), _SUBLANE))
    else:
        tb = tb_cap

    # Shrink the tile until resident weights + streamed x/out tiles (double-
    # buffered) + intermediate headroom fit the VMEM budget.  (For hidden
    # dims that blow the budget even at tb=8, cast weights to bf16 or stream
    # w2/w3 over an "arbitrary" hidden-K grid axis instead.)
    wfactor = 1 if single_buffer_weights else 2
    weight_bytes = wfactor * 4 * (latent * hp + hp * hp + hp * op + 2 * hp + op)
    budget = int(vmem_limit * 0.75)
    while tb > _SUBLANE and weight_bytes + 4 * tb * (2 * (latent + op) + 2 * hp) > budget:
        tb = max(_SUBLANE, _round_up(tb // 2, _SUBLANE))

    grid = (pl.cdiv(bp, tb),)

    def resident(shape):
        # Constant index map -> block fetched once; single-buffer halves its
        # VMEM footprint.
        if single_buffer_weights:
            return pl.BlockSpec(shape, lambda i: (0, 0),
                                pipeline_mode=pl.Buffered(1))
        return pl.BlockSpec(shape, lambda i: (0, 0))

    cost = pl.CostEstimate(
        flops=2 * bp * (latent * hp + hp * hp + hp * op),
        transcendentals=bp * op,
        bytes_accessed=4 * (bp * latent + latent * hp + hp * hp + hp * op
                            + 2 * hp + op + bp * op),
    )

    out_p = pl.pallas_call(
        decoder_kernel,
        out_shape=jax.ShapeDtypeStruct((bp, op), x.dtype),
        grid_spec=pltpu.PrefetchScalarGridSpec(
            num_scalar_prefetch=0,
            grid=grid,
            in_specs=[
                pl.BlockSpec((tb, latent), lambda i: (i, 0)),  # x: batch-tiled, K unpadded
                resident((latent, hp)),                        # w1: VMEM-resident
                resident((1, hp)),                             # b1
                resident((hp, hp)),                            # w2
                resident((1, hp)),                             # b2
                resident((hp, op)),                            # w3
                resident((1, op)),                             # b3
            ],
            out_specs=pl.BlockSpec((tb, op), lambda i: (i, 0)),
        ),
        compiler_params=pltpu.CompilerParams(
            dimension_semantics=("parallel",),
            vmem_limit_bytes=vmem_limit,
        ),
        cost_estimate=cost,
    )(x, w1, b1, w2, b2, w3, b3)

    # Slice away batch/lane padding (padded output columns hold sigmoid(0)=0.5).
    return out_p[:batch, :output_dim]


def decoder_reference(x, w1, b1, w2, b2, w3, b3):
    h = _leaky_relu(x @ w1 + b1)
    h = _leaky_relu(h @ w2 + b2)
    return jax.nn.sigmoid(h @ w3 + b3)


if __name__ == "__main__":
    # Small, deterministic synthetic setup.
    batch, latent_dim, hidden_dim, output_dim = 8, 16, 32, 64

    key = jax.random.PRNGKey(0)
    kx, k1, k2, k3, k4, k5, k6 = jax.random.split(key, 7)

    x = jax.random.normal(kx, (batch, latent_dim), dtype=jnp.float32)

    # Parameters stored as [in, out] (equivalent to torch weight transposed).
    w1 = jax.random.normal(k1, (latent_dim, hidden_dim), dtype=jnp.float32) * 0.1
    b1 = jax.random.normal(k2, (1, hidden_dim), dtype=jnp.float32) * 0.1
    w2 = jax.random.normal(k3, (hidden_dim, hidden_dim), dtype=jnp.float32) * 0.1
    b2 = jax.random.normal(k4, (1, hidden_dim), dtype=jnp.float32) * 0.1
    w3 = jax.random.normal(k5, (hidden_dim, output_dim), dtype=jnp.float32) * 0.1
    b3 = jax.random.normal(k6, (1, output_dim), dtype=jnp.float32) * 0.1

    # One-time parameter padding, hoisted out of the jitted forward.
    params, out_dim = prepare_decoder_params(w1, b1, w2, b2, w3, b3)

    try:
        out = jax.block_until_ready(decoder_forward(x, params, output_dim=out_dim))
    except Exception:
        # Fallback for environments where pl.Buffered(1) is not accepted in a
        # top-level pallas_call pipeline; identical math, default buffering.
        out = jax.block_until_ready(
            decoder_forward(x, params, output_dim=out_dim,
                            single_buffer_weights=False))

    ref = decoder_reference(x, w1, b1, w2, b2, w3, b3)
    assert out.shape == (batch, output_dim), out.shape
    assert jnp.allclose(out, ref, atol=2e-5, rtol=1e-5), "mismatch vs reference"

    print("KERNEL_OK")
</pallas_src>

<mosaic_0001>
module attributes {stable_mosaic.version = 11 : i64} {
  func.func @decoder_kernel(%arg0: i32, %arg1: memref<8x16xf32, #tpu.memory_space<vmem>>, %arg2: memref<16x128xf32, #tpu.memory_space<vmem>>, %arg3: memref<1x128xf32, #tpu.memory_space<vmem>>, %arg4: memref<128x128xf32, #tpu.memory_space<vmem>>, %arg5: memref<1x128xf32, #tpu.memory_space<vmem>>, %arg6: memref<128x128xf32, #tpu.memory_space<vmem>>, %arg7: memref<1x128xf32, #tpu.memory_space<vmem>>, %arg8: memref<8x128xf32, #tpu.memory_space<vmem>>) attributes {dimension_semantics = [#tpu.dimension_semantics<parallel>], iteration_bounds = array<i64: 1>, scalar_prefetch = 0 : i64, scratch_operands = 0 : i64, tpu.core_type = #tpu.core_type<tc>, window_params = [{transform_indices = @transform_0, window_bounds = array<i64: 8, 16>}, {pipeline_mode = #tpu.pipeline_mode<synchronous>, transform_indices = @transform_1, window_bounds = array<i64: 16, 128>}, {pipeline_mode = #tpu.pipeline_mode<synchronous>, transform_indices = @transform_2, window_bounds = array<i64: 1, 128>}, {pipeline_mode = #tpu.pipeline_mode<synchronous>, transform_indices = @transform_3, window_bounds = array<i64: 128, 128>}, {pipeline_mode = #tpu.pipeline_mode<synchronous>, transform_indices = @transform_4, window_bounds = array<i64: 1, 128>}, {pipeline_mode = #tpu.pipeline_mode<synchronous>, transform_indices = @transform_5, window_bounds = array<i64: 128, 128>}, {pipeline_mode = #tpu.pipeline_mode<synchronous>, transform_indices = @transform_6, window_bounds = array<i64: 1, 128>}, {transform_indices = @transform_7, window_bounds = array<i64: 8, 128>}]} {
    %c0 = arith.constant 0 : index
    %c0_0 = arith.constant 0 : index
    %0 = vector.load %arg1[%c0, %c0_0] : memref<8x16xf32, #tpu.memory_space<vmem>>, vector<8x16xf32>
    %c0_1 = arith.constant 0 : index
    %c0_2 = arith.constant 0 : index
    %1 = vector.load %arg2[%c0_1, %c0_2] : memref<16x128xf32, #tpu.memory_space<vmem>>, vector<16x128xf32>
    %cst = arith.constant dense<0.000000e+00> : vector<8x128xf32>
    %2 = tpu.matmul %0, %1, %cst {dimension_numbers = #tpu.dot_dimension_numbers<[1], [0], [0], [1], [0, 0, 1, 1], [], []>} : vector<8x16xf32>, vector<16x128xf32>, vector<8x128xf32> -> vector<8x128xf32>
    %c0_3 = arith.constant 0 : index
    %c0_4 = arith.constant 0 : index
    %3 = vector.load %arg3[%c0_3, %c0_4] : memref<1x128xf32, #tpu.memory_space<vmem>>, vector<1x128xf32>
    %4 = vector.broadcast %3 : vector<1x128xf32> to vector<8x128xf32>
    %5 = arith.addf %2, %4 : vector<8x128xf32>
    %cst_5 = arith.constant 0.000000e+00 : f32
    %6 = vector.broadcast %cst_5 : f32 to vector<8x128xf32>
    %7 = arith.cmpf ogt, %5, %6 : vector<8x128xf32>
    %cst_6 = arith.constant 2.000000e-01 : f32
    %8 = vector.broadcast %cst_6 : f32 to vector<8x128xf32>
    %9 = arith.mulf %8, %5 : vector<8x128xf32>
    %10 = arith.select %7, %5, %9 : vector<8x128xi1>, vector<8x128xf32>
    %c0_7 = arith.constant 0 : index
    %c0_8 = arith.constant 0 : index
    %11 = vector.load %arg4[%c0_7, %c0_8] : memref<128x128xf32, #tpu.memory_space<vmem>>, vector<128x128xf32>
    %cst_9 = arith.constant dense<0.000000e+00> : vector<8x128xf32>
    %12 = tpu.matmul %10, %11, %cst_9 {dimension_numbers = #tpu.dot_dimension_numbers<[1], [0], [0], [1], [0, 0, 1, 1], [], []>} : vector<8x128xf32>, vector<128x128xf32>, vector<8x128xf32> -> vector<8x128xf32>
    %c0_10 = arith.constant 0 : index
    %c0_11 = arith.constant 0 : index
    %13 = vector.load %arg5[%c0_10, %c0_11] : memref<1x128xf32, #tpu.memory_space<vmem>>, vector<1x128xf32>
    %14 = vector.broadcast %13 : vector<1x128xf32> to vector<8x128xf32>
    %15 = arith.addf %12, %14 : vector<8x128xf32>
    %cst_12 = arith.constant 0.000000e+00 : f32
    %16 = vector.broadcast %cst_12 : f32 to vector<8x128xf32>
    %17 = arith.cmpf ogt, %15, %16 : vector<8x128xf32>
    %cst_13 = arith.constant 2.000000e-01 : f32
    %18 = vector.broadcast %cst_13 : f32 to vector<8x128xf32>
    %19 = arith.mulf %18, %15 : vector<8x128xf32>
    %20 = arith.select %17, %15, %19 : vector<8x128xi1>, vector<8x128xf32>
    %c0_14 = arith.constant 0 : index
    %c0_15 = arith.constant 0 : index
    %21 = vector.load %arg6[%c0_14, %c0_15] : memref<128x128xf32, #tpu.memory_space<vmem>>, vector<128x128xf32>
    %cst_16 = arith.constant dense<0.000000e+00> : vector<8x128xf32>
    %22 = tpu.matmul %20, %21, %cst_16 {dimension_numbers = #tpu.dot_dimension_numbers<[1], [0], [0], [1], [0, 0, 1, 1], [], []>} : vector<8x128xf32>, vector<128x128xf32>, vector<8x128xf32> -> vector<8x128xf32>
    %c0_17 = arith.constant 0 : index
    %c0_18 = arith.constant 0 : index
    %23 = vector.load %arg7[%c0_17, %c0_18] : memref<1x128xf32, #tpu.memory_space<vmem>>, vector<1x128xf32>
    %24 = vector.broadcast %23 : vector<1x128xf32> to vector<8x128xf32>
    %25 = arith.addf %22, %24 : vector<8x128xf32>
    %26 = arith.negf %25 : vector<8x128xf32>
    %27 = math.exp %26 : vector<8x128xf32>
    %cst_19 = arith.constant 1.000000e+00 : f32
    %28 = vector.broadcast %cst_19 : f32 to vector<8x128xf32>
    %29 = arith.addf %28, %27 : vector<8x128xf32>
    %30 = arith.divf %28, %29 : vector<8x128xf32>
    %c0_20 = arith.constant 0 : index
    %c0_21 = arith.constant 0 : index
    %31 = vector.load %arg8[%c0_20, %c0_21] : memref<8x128xf32, #tpu.memory_space<vmem>>, vector<8x128xf32>
    tpu.vector_store %arg8[%c0_20, %c0_21], %30 {strides = array<i32>} : memref<8x128xf32, #tpu.memory_space<vmem>>, vector<8x128xf32>,
    return
  }
  func.func @transform_0(%arg0: i32) -> (i32, i32) {
    %c0_i32 = arith.constant 0 : i32
    %c0_i32_0 = arith.constant 0 : i32
    return %arg0, %c0_i32 : i32, i32
  }
  func.func @transform_1(%arg0: i32) -> (i32, i32) {
    %c0_i32 = arith.constant 0 : i32
    %c0_i32_0 = arith.constant 0 : i32
    %c0_i32_1 = arith.constant 0 : i32
    return %c0_i32, %c0_i32_0 : i32, i32
  }
  func.func @transform_2(%arg0: i32) -> (i32, i32) {
    %c0_i32 = arith.constant 0 : i32
    %c0_i32_0 = arith.constant 0 : i32
    %c0_i32_1 = arith.constant 0 : i32
    return %c0_i32, %c0_i32_0 : i32, i32
  }
  func.func @transform_3(%arg0: i32) -> (i32, i32) {
    %c0_i32 = arith.constant 0 : i32
    %c0_i32_0 = arith.constant 0 : i32
    %c0_i32_1 = arith.constant 0 : i32
    return %c0_i32, %c0_i32_0 : i32, i32
  }
  func.func @transform_4(%arg0: i32) -> (i32, i32) {
    %c0_i32 = arith.constant 0 : i32
    %c0_i32_0 = arith.constant 0 : i32
    %c0_i32_1 = arith.constant 0 : i32
    return %c0_i32, %c0_i32_0 : i32, i32
  }
  func.func @transform_5(%arg0: i32) -> (i32, i32) {
    %c0_i32 = arith.constant 0 : i32
    %c0_i32_0 = arith.constant 0 : i32
    %c0_i32_1 = arith.constant 0 : i32
    return %c0_i32, %c0_i32_0 : i32, i32
  }
  func.func @transform_6(%arg0: i32) -> (i32, i32) {
    %c0_i32 = arith.constant 0 : i32
    %c0_i32_0 = arith.constant 0 : i32
    %c0_i32_1 = arith.constant 0 : i32
    return %c0_i32, %c0_i32_0 : i32, i32
  }
  func.func @transform_7(%arg0: i32) -> (i32, i32) {
    %c0_i32 = arith.constant 0 : i32
    %c0_i32_0 = arith.constant 0 : i32
    return %arg0, %c0_i32 : i32, i32
  }
}

module attributes {stable_mosaic.version = 11 : i64} {
  func.func @decoder_kernel(%arg0: i32, %arg1: memref<8x16xf32, #tpu.memory_space<vmem>>, %arg2: memref<16x128xf32, #tpu.memory_space<vmem>>, %arg3: memref<1x128xf32, #tpu.memory_space<vmem>>, %arg4: memref<128x128xf32, #tpu.memory_space<vmem>>, %arg5: memref<1x128xf32, #tpu.memory_space<vmem>>, %arg6: memref<128x128xf32, #tpu.memory_space<vmem>>, %arg7: memref<1x128xf32, #tpu.memory_space<vmem>>, %arg8: memref<8x128xf32, #tpu.memory_space<vmem>>) attributes {dimension_semantics = [#tpu.dimension_semantics<parallel>], iteration_bounds = array<i64: 1>, scalar_prefetch = 0 : i64, scratch_operands = 0 : i64, tpu.core_type = #tpu.core_type<tc>, window_params = [{transform_indices = @transform_0, window_bounds = array<i64: 8, 16>}, {pipeline_mode = #tpu.pipeline_mode<synchronous>, transform_indices = @transform_1, window_bounds = array<i64: 16, 128>}, {pipeline_mode = #tpu.pipeline_mode<synchronous>, transform_indices = @transform_2, window_bounds = array<i64: 1, 128>}, {pipeline_mode = #tpu.pipeline_mode<synchronous>, transform_indices = @transform_3, window_bounds = array<i64: 128, 128>}, {pipeline_mode = #tpu.pipeline_mode<synchronous>, transform_indices = @transform_4, window_bounds = array<i64: 1, 128>}, {pipeline_mode = #tpu.pipeline_mode<synchronous>, transform_indices = @transform_5, window_bounds = array<i64: 128, 128>}, {pipeline_mode = #tpu.pipeline_mode<synchronous>, transform_indices = @transform_6, window_bounds = array<i64: 1, 128>}, {transform_indices = @transform_7, window_bounds = array<i64: 8, 128>}]} {
    %c0 = arith.constant 0 : index
    %c0_0 = arith.constant 0 : index
    %0 = vector.load %arg1[%c0, %c0_0] : memref<8x16xf32, #tpu.memory_space<vmem>>, vector<8x16xf32>
    %c0_1 = arith.constant 0 : index
    %c0_2 = arith.constant 0 : index
    %1 = vector.load %arg2[%c0_1, %c0_2] : memref<16x128xf32, #tpu.memory_space<vmem>>, vector<16x128xf32>
    %cst = arith.constant dense<0.000000e+00> : vector<8x128xf32>
    %2 = tpu.matmul %0, %1, %cst {dimension_numbers = #tpu.dot_dimension_numbers<[1], [0], [0], [1], [0, 0, 1, 1], [], []>} : vector<8x16xf32>, vector<16x128xf32>, vector<8x128xf32> -> vector<8x128xf32>
    %c0_3 = arith.constant 0 : index
    %c0_4 = arith.constant 0 : index
    %3 = vector.load %arg3[%c0_3, %c0_4] : memref<1x128xf32, #tpu.memory_space<vmem>>, vector<1x128xf32>
    %4 = vector.broadcast %3 : vector<1x128xf32> to vector<8x128xf32>
    %5 = arith.addf %2, %4 : vector<8x128xf32>
    %cst_5 = arith.constant 0.000000e+00 : f32
    %6 = vector.broadcast %cst_5 : f32 to vector<8x128xf32>
    %7 = arith.cmpf ogt, %5, %6 : vector<8x128xf32>
    %cst_6 = arith.constant 2.000000e-01 : f32
    %8 = vector.broadcast %cst_6 : f32 to vector<8x128xf32>
    %9 = arith.mulf %8, %5 : vector<8x128xf32>
    %10 = arith.select %7, %5, %9 : vector<8x128xi1>, vector<8x128xf32>
    %c0_7 = arith.constant 0 : index
    %c0_8 = arith.constant 0 : index
    %11 = vector.load %arg4[%c0_7, %c0_8] : memref<128x128xf32, #tpu.memory_space<vmem>>, vector<128x128xf32>
    %cst_9 = arith.constant dense<0.000000e+00> : vector<8x128xf32>
    %12 = tpu.matmul %10, %11, %cst_9 {dimension_numbers = #tpu.dot_dimension_numbers<[1], [0], [0], [1], [0, 0, 1, 1], [], []>} : vector<8x128xf32>, vector<128x128xf32>, vector<8x128xf32> -> vector<8x128xf32>
    %c0_10 = arith.constant 0 : index
    %c0_11 = arith.constant 0 : index
    %13 = vector.load %arg5[%c0_10, %c0_11] : memref<1x128xf32, #tpu.memory_space<vmem>>, vector<1x128xf32>
    %14 = vector.broadcast %13 : vector<1x128xf32> to vector<8x128xf32>
    %15 = arith.addf %12, %14 : vector<8x128xf32>
    %cst_12 = arith.constant 0.000000e+00 : f32
    %16 = vector.broadcast %cst_12 : f32 to vector<8x128xf32>
    %17 = arith.cmpf ogt, %15, %16 : vector<8x128xf32>
    %cst_13 = arith.constant 2.000000e-01 : f32
    %18 = vector.broadcast %cst_13 : f32 to vector<8x128xf32>
    %19 = arith.mulf %18, %15 : vector<8x128xf32>
    %20 = arith.select %17, %15, %19 : vector<8x128xi1>, vector<8x128xf32>
    %c0_14 = arith.constant 0 : index
    %c0_15 = arith.constant 0 : index
    %21 = vector.load %arg6[%c0_14, %c0_15] : memref<128x128xf32, #tpu.memory_space<vmem>>, vector<128x128xf32>
    %cst_16 = arith.constant dense<0.000000e+00> : vector<8x128xf32>
    %22 = tpu.matmul %20, %21, %cst_16 {dimension_numbers = #tpu.dot_dimension_numbers<[1], [0], [0], [1], [0, 0, 1, 1], [], []>} : vector<8x128xf32>, vector<128x128xf32>, vector<8x128xf32> -> vector<8x128xf32>
    %c0_17 = arith.constant 0 : index
    %c0_18 = arith.constant 0 : index
    %23 = vector.load %arg7[%c0_17, %c0_18] : memref<1x128xf32, #tpu.memory_space<vmem>>, vector<1x128xf32>
    %24 = vector.broadcast %23 : vector<1x128xf32> to vector<8x128xf32>
    %25 = arith.addf %22, %24 : vector<8x128xf32>
    %26 = arith.negf %25 : vector<8x128xf32>
    %27 = math.exp %26 : vector<8x128xf32>
    %cst_19 = arith.constant 1.000000e+00 : f32
    %28 = vector.broadcast %cst_19 : f32 to vector<8x128xf32>
    %29 = arith.addf %28, %27 : vector<8x128xf32>
    %30 = arith.divf %28, %29 : vector<8x128xf32>
    %c0_20 = arith.constant 0 : index
    %c0_21 = arith.constant 0 : index
    %31 = vector.load %arg8[%c0_20, %c0_21] : memref<8x128xf32, #tpu.memory_space<vmem>>, vector<8x128xf32>
    tpu.vector_store %arg8[%c0_20, %c0_21], %30 {strides = array<i32>} : memref<8x128xf32, #tpu.memory_space<vmem>>, vector<8x128xf32>,
    return
  }
  func.func @transform_0(%arg0: i32) -> (i32, i32) {
    %c0_i32 = arith.constant 0 : i32
    %c0_i32_0 = arith.constant 0 : i32
    return %arg0, %c0_i32 : i32, i32
  }
  func.func @transform_1(%arg0: i32) -> (i32, i32) {
    %c0_i32 = arith.constant 0 : i32
    %c0_i32_0 = arith.constant 0 : i32
    %c0_i32_1 = arith.constant 0 : i32
    return %c0_i32, %c0_i32_0 : i32, i32
  }
  func.func @transform_2(%arg0: i32) -> (i32, i32) {
    %c0_i32 = arith.constant 0 : i32
    %c0_i32_0 = arith.constant 0 : i32
    %c0_i32_1 = arith.constant 0 : i32
    return %c0_i32, %c0_i32_0 : i32, i32
  }
  func.func @transform_3(%arg0: i32) -> (i32, i32) {
    %c0_i32 = arith.constant 0 : i32
    %c0_i32_0 = arith.constant 0 : i32
    %c0_i32_1 = arith.constant 0 : i32
    return %c0_i32, %c0_i32_0 : i32, i32
  }
  func.func @transform_4(%arg0: i32) -> (i32, i32) {
    %c0_i32 = arith.constant 0 : i32
    %c0_i32_0 = arith.constant 0 : i32
    %c0_i32_1 = arith.constant 0 : i32
    return %c0_i32, %c0_i32_0 : i32, i32
  }
  func.func @transform_5(%arg0: i32) -> (i32, i32) {
    %c0_i32 = arith.constant 0 : i32
    %c0_i32_0 = arith.constant 0 : i32
    %c0_i32_1 = arith.constant 0 : i32
    return %c0_i32, %c0_i32_0 : i32, i32
  }
  func.func @transform_6(%arg0: i32) -> (i32, i32) {
    %c0_i32 = arith.constant 0 : i32
    %c0_i32_0 = arith.constant 0 : i32
    %c0_i32_1 = arith.constant 0 : i32
    return %c0_i32, %c0_i32_0 : i32, i32
  }
  func.func @transform_7(%arg0: i32) -> (i32, i32) {
    %c0_i32 = arith.constant 0 : i32
    %c0_i32_0 = arith.constant 0 : i32
    return %arg0, %c0_i32 : i32, i32
  }
}

</mosaic_0001>

<llo_original>
// kernel: decoder_forward.1
$region0: #{decoder_forward.1}
  #allocation0 [shape = 'u32[]', space=smem, size = 0x4, offset = 0x4, fixed_abs, tag = 'smem constant byte address 0x4 - core index']
  #allocation1 [shape = 'u32[144,128]{1,0:T(1,128)}', space=vmem, size = 0x12000, scoped, tag = 'internal scratch']
  %s0 = inlined_call_operand.hbm [shape: f32[8,16], index: 0, kind: input, shape index: {}]
  %s1 = inlined_call_operand.hbm [shape: f32[16,128], index: 1, kind: input, shape index: {}]
  %s2 = inlined_call_operand.vmem [shape: f32[1,128], index: 2, kind: input, shape index: {}]
  %s3 = inlined_call_operand.hbm [shape: f32[128,128], index: 3, kind: input, shape index: {}]
  %s4 = inlined_call_operand.vmem [shape: f32[1,128], index: 4, kind: input, shape index: {}]
  %s5 = inlined_call_operand.hbm [shape: f32[128,128], index: 5, kind: input, shape index: {}]
  %s6 = inlined_call_operand.vmem [shape: f32[1,128], index: 6, kind: input, shape index: {}]
  %s7 = inlined_call_operand.hbm [shape: f32[8,128], index: 7, kind: output, shape index: {}]
  %s8 = sld [smem:[#allocation0]]
  $region54: #{decoder_forward.1} parent=0
    _
  %s10 = ssub.s32 1, %s8
  %s11 = scalar_select 0, %s10, %s8
  $region1: #{decoder_forward.1} parent=0
    #allocation2 [shape = 'u8[4096]{0}', space=vmem, size = 0x1000, scoped, tag = 'input window, operand 0, single buffered']
    #allocation3 [shape = 's32[1]{0}', space=sflag, size = 0x4, scoped, tag = 'scoped memory for decoder_forward.1']
    #allocation4 [shape = 's32[1]{0}', space=sflag, size = 0x4, scoped, tag = 'scoped memory for decoder_forward.1']
    #allocation5 [shape = 'u8[8192]{0}', space=vmem, size = 0x2000, scoped, tag = 'input window, operand 1, single buffered']
    #allocation6 [shape = 's32[1]{0}', space=sflag, size = 0x4, scoped, tag = 'scoped memory for decoder_forward.1']
    #allocation7 [shape = 'u8[65536]{0}', space=vmem, size = 0x10000, scoped, tag = 'input window, operand 3, single buffered']
    #allocation8 [shape = 'u8[65536]{0}', space=vmem, size = 0x10000, scoped, tag = 'input window, operand 5, single buffered']
    #allocation9 [shape = 's32[1]{0}', space=sflag, size = 0x4, scoped, tag = 'scoped memory for decoder_forward.1']
    #allocation10 [shape = 'u8[4096]{0}', space=vmem, size = 0x1000, scoped, tag = 'output window, operand 0, single buffered']
    %12 = vsyncpa [#allocation3], 0
    %13 = vsyncpa [#allocation6], 0
    %14 = vsyncpa [#allocation9], 0
    %15 = vsyncpa [#allocation4], 0
    // Predicated region
    $region2: #{decoder_forward.1} parent=1 // pred_check
      _
    $region3: #{decoder_forward.1} parent=1 // pred_check_branch
      %17 = sbr.rel (0) target = $region5
    $region4: #{decoder_forward.1} parent=1 // pred_region
      %s19 = ssub.s32 128, 128
      %20 = vsyncadd [#allocation3], %s19
      %s22 = sshll.u32 [#allocation2], 4
      %s23 = int_to_ptr.vmem [resolvable:$true] %s22
      %25 = dma.hbm_to_vmem [thread:$0]  %s0, 128, %s23, [#allocation3]
    $region5: #{decoder_forward.1} parent=1 // pred_fallthru
      _
    // Predicated region
    $region6: #{decoder_forward.1} parent=1 // pred_check
      _
    $region7: #{decoder_forward.1} parent=1 // pred_check_branch
      %27 = sbr.rel (0) target = $region9
    $region8: #{decoder_forward.1} parent=1 // pred_region
      %s29 = ssub.s32 256, 256
      %30 = vsyncadd [#allocation6], %s29
      %s31 = sshll.u32 [#allocation5], 4
      %s32 = int_to_ptr.vmem [resolvable:$true] %s31
      %37 = dma.hbm_to_vmem [thread:$0]  %s1, 256, %s32, [#allocation6], 128, 128, 8
    $region9: #{decoder_forward.1} parent=1 // pred_fallthru
      _
    // Predicated region
    $region10: #{decoder_forward.1} parent=1 // pred_check
      _
    $region11: #{decoder_forward.1} parent=1 // pred_check_branch
      %39 = sbr.rel (0) target = $region13
    $region12: #{decoder_forward.1} parent=1 // pred_region
      _
    $region13: #{decoder_forward.1} parent=1 // pred_fallthru
      _
    // Predicated region
    $region14: #{decoder_forward.1} parent=1 // pred_check
      _
    $region15: #{decoder_forward.1} parent=1 // pred_check_branch
      %41 = sbr.rel (0) target = $region17
    $region16: #{decoder_forward.1} parent=1 // pred_region
      %s43 = ssub.s32 2048, 2048
      %44 = vsyncadd [#allocation6], %s43
      %s45 = sshll.u32 [#allocation7], 4
      %s46 = int_to_ptr.vmem [resolvable:$true] %s45
      %51 = dma.hbm_to_vmem [thread:$0]  %s3, 2048, %s46, [#allocation6], 128, 128, 8
    $region17: #{decoder_forward.1} parent=1 // pred_fallthru
      _
    // Predicated region
    $region18: #{decoder_forward.1} parent=1 // pred_check
      _
    $region19: #{decoder_forward.1} parent=1 // pred_check_branch
      %53 = sbr.rel (0) target = $region21
    $region20: #{decoder_forward.1} parent=1 // pred_region
      _
    $region21: #{decoder_forward.1} parent=1 // pred_fallthru
      _
    // Predicated region
    $region22: #{decoder_forward.1} parent=1 // pred_check
      _
    $region23: #{decoder_forward.1} parent=1 // pred_check_branch
      %55 = sbr.rel (0) target = $region25
    $region24: #{decoder_forward.1} parent=1 // pred_region
      %s57 = ssub.s32 2048, 2048
      %58 = vsyncadd [#allocation9], %s57
      %s59 = sshll.u32 [#allocation8], 4
      %s60 = int_to_ptr.vmem [resolvable:$true] %s59
      %65 = dma.hbm_to_vmem [thread:$0]  %s5, 2048, %s60, [#allocation9], 128, 128, 8
    $region25: #{decoder_forward.1} parent=1 // pred_fallthru
      _
    // Predicated region
    $region26: #{decoder_forward.1} parent=1 // pred_check
      _
    $region27: #{decoder_forward.1} parent=1 // pred_check_branch
      %67 = sbr.rel (0) target = $region29
    $region28: #{decoder_forward.1} parent=1 // pred_region
      _
    $region29: #{decoder_forward.1} parent=1 // pred_fallthru
      _
    // Predicated region
    $region30: #{decoder_forward.1} parent=1 // pred_check
      _
    $region31: #{decoder_forward.1} parent=1 // pred_check_branch
      %69 = sbr.rel (0) target = $region33
    $region32: #{decoder_forward.1} parent=1 // pred_region
      %70 = dma.done [#allocation3], 128
    $region33: #{decoder_forward.1} parent=1 // pred_fallthru
      _
    // Predicated region
    $region34: #{decoder_forward.1} parent=1 // pred_check
      _
    $region35: #{decoder_forward.1} parent=1 // pred_check_branch
      %72 = sbr.rel (0) target = $region37
    $region36: #{decoder_forward.1} parent=1 // pred_region
      %73 = dma.done [#allocation6], 256
    $region37: #{decoder_forward.1} parent=1 // pred_fallthru
      _
    // Predicated region
    $region38: #{decoder_forward.1} parent=1 // pred_check
      _
    $region39: #{decoder_forward.1} parent=1 // pred_check_branch
      %75 = sbr.rel (0) target = $region41
    $region40: #{decoder_forward.1} parent=1 // pred_region
      %76 = dma.done [#allocation6], 2048
    $region41: #{decoder_forward.1} parent=1 // pred_fallthru
      _
    // Predicated region
    $region42: #{decoder_forward.1} parent=1 // pred_check
      _
    $region43: #{decoder_forward.1} parent=1 // pred_check_branch
      %78 = sbr.rel (0) target = $region45
    $region44: #{decoder_forward.1} parent=1 // pred_region
      %79 = dma.done [#allocation9], 2048
    $region45: #{decoder_forward.1} parent=1 // pred_fallthru
      _
    %v80 = vld [vmem:[#allocation2] sm:$0xff]
    %v81 = vld [vmem:[#allocation5] sm:$0xff]
    %v82 = vld [vmem:[#allocation5 + $0x8] sm:$0xff]
    %v83 = vld [vmem:[%s2] sm:$0x1]
    %v85 = vlaneseq
    %v86 = vshrl.u32 %v85, 7
    %v87 = vsub.s32 0, %v86
    %v88 = vrot.slane %v83, %v87
    %vm90 = vcmask 130048
    %v92 = vsel %vm90, %v80, 0
    %94 = vmatprep.subr.mxu0 0.0
    %95 = vmatpush1.msra.mxu0 %v81
    %96 = vmatprep.subr.mxu0 0.0
    %97 = vmatpush1.msra.mxu0 %v82
    %98 = vmatprep.subr.mxu0 0.0
    %99 = vmatpush1.msra.mxu0 0.0
    %100 = vmatprep.subr.mxu0 0.0
    %101 = vmatpush1.msra.mxu0 0.0
    %102 = vmatprep.subr.mxu0 0.0
    %103 = vmatpush1.msra.mxu0 0.0
    %104 = vmatprep.subr.mxu0 0.0
    %105 = vmatpush1.msra.mxu0 0.0
    %106 = vmatprep.subr.mxu0 0.0
    %107 = vmatpush1.msra.mxu0 0.0
    %108 = vmatprep.subr.mxu0 0.0
    %109 = vmatpush1.msra.mxu0 0.0
    %110 = vmatprep.subr.mxu0 0.0
    %111 = vmatpush1.msra.mxu0 0.0
    %112 = vmatprep.subr.mxu0 0.0
    %113 = vmatpush1.msra.mxu0 0.0
    %114 = vmatprep.subr.mxu0 0.0
    %115 = vmatpush1.msra.mxu0 0.0
    %116 = vmatprep.subr.mxu0 0.0
    %117 = vmatpush1.msra.mxu0 0.0
    %118 = vmatprep.subr.mxu0 0.0
    %119 = vmatpush1.msra.mxu0 0.0
    %120 = vmatprep.subr.mxu0 0.0
    %121 = vmatpush1.msra.mxu0 0.0
    %122 = vmatprep.subr.mxu0 0.0
    %123 = vmatpush1.msra.mxu0 0.0
    %124 = vmatprep.subr.mxu0 0.0
    %125 = vmatpush1.msra.mxu0 0.0
    %126 = vmatprep.subr.mxu0 0.0
    %127 = vmatpush1.msra.mxu0 0.0
    %128 = vmatprep.subr.mxu0 0.0
    %129 = vmatpush1.msra.mxu0 0.0
    %130 = vmatprep.subr.mxu0 0.0
    %131 = vmatpush1.msra.mxu0 0.0
    %132 = vmatprep.subr.mxu0 0.0
    %133 = vmatpush1.msra.mxu0 0.0
    %134 = vmatprep.subr.mxu0 0.0
    %135 = vmatpush1.msra.mxu0 0.0
    %136 = vmatprep.subr.mxu0 0.0
    %137 = vmatpush1.msra.mxu0 0.0
    %138 = vmatprep.subr.mxu0 0.0
    %139 = vmatpush1.msra.mxu0 0.0
    %140 = vmatprep.subr.mxu0 0.0
    %141 = vmatpush1.msra.mxu0 0.0
    %142 = vmatprep.subr.mxu0 0.0
    %143 = vmatpush1.msra.mxu0 0.0
    %144 = vmatprep.subr.mxu0 0.0
    %145 = vmatpush1.msra.mxu0 0.0
    %146 = vmatprep.subr.mxu0 0.0
    %147 = vmatpush1.msra.mxu0 0.0
    %148 = vmatprep.subr.mxu0 0.0
    %149 = vmatpush1.msra.mxu0 0.0
    %150 = vmatprep.subr.mxu0 0.0
    %151 = vmatpush1.msra.mxu0 0.0
    %152 = vmatprep.subr.mxu0 0.0
    %153 = vmatpush1.msra.mxu0 0.0
    %154 = vmatprep.subr.mxu0 0.0
    %155 = vmatpush1.msra.mxu0 0.0
    %156 = vmatprep.subr.mxu0 0.0
    %157 = vmatpush1.msra.mxu0 0.0
    %158 = vmatprep.mubr.f32.mxu0 0.0
    %159 = vmatmul.mubr.f32.gmra.mrb[0].mxu0 %v92
    %v160 = vpop.f32.mrb[0].mxu0
    %v161 = vadd.f32 %v88, %v160
    %v162 = vpop.f32.mrb[0].mxu0
    %163 = vdwg.mxu0
    %vm164 = vcmp.gt.f32.partialorder %v161, 0.0
    %v165 = vmul.f32 %v161, 0.2
    %v166 = vsel %vm164, %v161, %v165
    %v167 = vld [vmem:[#allocation7] sm:$0xff]
    %v168 = vld [vmem:[#allocation7 + $0x8] sm:$0xff]
    %v169 = vld [vmem:[#allocation7 + $0x10] sm:$0xff]
    %v170 = vld [vmem:[#allocation7 + $0x18] sm:$0xff]
    %v171 = vld [vmem:[#allocation7 + $0x20] sm:$0xff]
    %v172 = vld [vmem:[#allocation7 + $0x28] sm:$0xff]
    %v173 = vld [vmem:[#allocation7 + $0x30] sm:$0xff]
    %v174 = vld [vmem:[#allocation7 + $0x38] sm:$0xff]
    %v175 = vld [vmem:[#allocation7 + $0x40] sm:$0xff]
    %v176 = vld [vmem:[#allocation7 + $0x48] sm:$0xff]
    %v177 = vld [vmem:[#allocation7 + $0x50] sm:$0xff]
    %v178 = vld [vmem:[#allocation7 + $0x58] sm:$0xff]
    %v179 = vld [vmem:[#allocation7 + $0x60] sm:$0xff]
    %v180 = vld [vmem:[#allocation7 + $0x68] sm:$0xff]
    %v181 = vld [vmem:[#allocation7 + $0x70] sm:$0xff]
    %v182 = vld [vmem:[#allocation7 + $0x78] sm:$0xff]
    %v183 = vld [vmem:[%s4] sm:$0x1]
    %v185 = vlaneseq
    %v186 = vshrl.u32 %v185, 7
    %v187 = vsub.s32 0, %v186
    %v188 = vrot.slane %v183, %v187
    %190 = vmatprep.subr.mxu0 0.0
    %191 = vmatpush1.msra.mxu0 %v167
    %192 = vmatprep.subr.mxu0 0.0
    %193 = vmatpush1.msra.mxu0 %v168
    %194 = vmatprep.subr.mxu0 0.0
    %195 = vmatpush1.msra.mxu0 %v169
    %196 = vmatprep.subr.mxu0 0.0
    %197 = vmatpush1.msra.mxu0 %v170
    %198 = vmatprep.subr.mxu0 0.0
    %199 = vmatpush1.msra.mxu0 %v171
    %200 = vmatprep.subr.mxu0 0.0
    %201 = vmatpush1.msra.mxu0 %v172
    %202 = vmatprep.subr.mxu0 0.0
    %203 = vmatpush1.msra.mxu0 %v173
    %204 = vmatprep.subr.mxu0 0.0
    %205 = vmatpush1.msra.mxu0 %v174
    %206 = vmatprep.subr.mxu0 0.0
    %207 = vmatpush1.msra.mxu0 %v175
    %208 = vmatprep.subr.mxu0 0.0
    %209 = vmatpush1.msra.mxu0 %v176
    %210 = vmatprep.subr.mxu0 0.0
    %211 = vmatpush1.msra.mxu0 %v177
    %212 = vmatprep.subr.mxu0 0.0
    %213 = vmatpush1.msra.mxu0 %v178
    %214 = vmatprep.subr.mxu0 0.0
    %215 = vmatpush1.msra.mxu0 %v179
    %216 = vmatprep.subr.mxu0 0.0
    %217 = vmatpush1.msra.mxu0 %v180
    %218 = vmatprep.subr.mxu0 0.0
    %219 = vmatpush1.msra.mxu0 %v181
    %220 = vmatprep.subr.mxu0 0.0
    %221 = vmatpush1.msra.mxu0 %v182
    %222 = vmatprep.subr.mxu0 0.0
    %223 = vmatpush1.msra.mxu0 0.0
    %224 = vmatprep.subr.mxu0 0.0
    %225 = vmatpush1.msra.mxu0 0.0
    %226 = vmatprep.subr.mxu0 0.0
    %227 = vmatpush1.msra.mxu0 0.0
    %228 = vmatprep.subr.mxu0 0.0
    %229 = vmatpush1.msra.mxu0 0.0
    %230 = vmatprep.subr.mxu0 0.0
    %231 = vmatpush1.msra.mxu0 0.0
    %232 = vmatprep.subr.mxu0 0.0
    %233 = vmatpush1.msra.mxu0 0.0
    %234 = vmatprep.subr.mxu0 0.0
    %235 = vmatpush1.msra.mxu0 0.0
    %236 = vmatprep.subr.mxu0 0.0
    %237 = vmatpush1.msra.mxu0 0.0
    %238 = vmatprep.subr.mxu0 0.0
    %239 = vmatpush1.msra.mxu0 0.0
    %240 = vmatprep.subr.mxu0 0.0
    %241 = vmatpush1.msra.mxu0 0.0
    %242 = vmatprep.subr.mxu0 0.0
    %243 = vmatpush1.msra.mxu0 0.0
    %244 = vmatprep.subr.mxu0 0.0
    %245 = vmatpush1.msra.mxu0 0.0
    %246 = vmatprep.subr.mxu0 0.0
    %247 = vmatpush1.msra.mxu0 0.0
    %248 = vmatprep.subr.mxu0 0.0
    %249 = vmatpush1.msra.mxu0 0.0
    %250 = vmatprep.subr.mxu0 0.0
    %251 = vmatpush1.msra.mxu0 0.0
    %252 = vmatprep.subr.mxu0 0.0
    %253 = vmatpush1.msra.mxu0 0.0
    %254 = vmatprep.mubr.f32.mxu0 0.0
    %255 = vmatmul.mubr.f32.gmra.mrb[0].mxu0 %v166
    %v256 = vpop.f32.mrb[0].mxu0
    %v257 = vadd.f32 %v188, %v256
    %v258 = vpop.f32.mrb[0].mxu0
    %259 = vdwg.mxu0
    %vm260 = vcmp.gt.f32.partialorder %v257, 0.0
    %v261 = vmul.f32 %v257, 0.2
    %v262 = vsel %vm260, %v257, %v261
    %v263 = vld [vmem:[#allocation8] sm:$0xff]
    %v264 = vld [vmem:[#allocation8 + $0x8] sm:$0xff]
    %v265 = vld [vmem:[#allocation8 + $0x10] sm:$0xff]
    %v266 = vld [vmem:[#allocation8 + $0x18] sm:$0xff]
    %v267 = vld [vmem:[#allocation8 + $0x20] sm:$0xff]
    %v268 = vld [vmem:[#allocation8 + $0x28] sm:$0xff]
    %v269 = vld [vmem:[#allocation8 + $0x30] sm:$0xff]
    %v270 = vld [vmem:[#allocation8 + $0x38] sm:$0xff]
    %v271 = vld [vmem:[#allocation8 + $0x40] sm:$0xff]
    %v272 = vld [vmem:[#allocation8 + $0x48] sm:$0xff]
    %v273 = vld [vmem:[#allocation8 + $0x50] sm:$0xff]
    %v274 = vld [vmem:[#allocation8 + $0x58] sm:$0xff]
    %v275 = vld [vmem:[#allocation8 + $0x60] sm:$0xff]
    %v276 = vld [vmem:[#allocation8 + $0x68] sm:$0xff]
    %v277 = vld [vmem:[#allocation8 + $0x70] sm:$0xff]
    %v278 = vld [vmem:[#allocation8 + $0x78] sm:$0xff]
    %v279 = vld [vmem:[%s6] sm:$0x1]
    %v281 = vlaneseq
    %v282 = vshrl.u32 %v281, 7
    %v283 = vsub.s32 0, %v282
    %v284 = vrot.slane %v279, %v283
    %286 = vmatprep.subr.mxu0 0.0
    %287 = vmatpush1.msra.mxu0 %v263
    %288 = vmatprep.subr.mxu0 0.0
    %289 = vmatpush1.msra.mxu0 %v264
    %290 = vmatprep.subr.mxu0 0.0
    %291 = vmatpush1.msra.mxu0 %v265
    %292 = vmatprep.subr.mxu0 0.0
    %293 = vmatpush1.msra.mxu0 %v266
    %294 = vmatprep.subr.mxu0 0.0
    %295 = vmatpush1.msra.mxu0 %v267
    %296 = vmatprep.subr.mxu0 0.0
    %297 = vmatpush1.msra.mxu0 %v268
    %298 = vmatprep.subr.mxu0 0.0
    %299 = vmatpush1.msra.mxu0 %v269
    %300 = vmatprep.subr.mxu0 0.0
    %301 = vmatpush1.msra.mxu0 %v270
    %302 = vmatprep.subr.mxu0 0.0
    %303 = vmatpush1.msra.mxu0 %v271
    %304 = vmatprep.subr.mxu0 0.0
    %305 = vmatpush1.msra.mxu0 %v272
    %306 = vmatprep.subr.mxu0 0.0
    %307 = vmatpush1.msra.mxu0 %v273
    %308 = vmatprep.subr.mxu0 0.0
    %309 = vmatpush1.msra.mxu0 %v274
    %310 = vmatprep.subr.mxu0 0.0
    %311 = vmatpush1.msra.mxu0 %v275
    %312 = vmatprep.subr.mxu0 0.0
    %313 = vmatpush1.msra.mxu0 %v276
    %314 = vmatprep.subr.mxu0 0.0
    %315 = vmatpush1.msra.mxu0 %v277
    %316 = vmatprep.subr.mxu0 0.0
    %317 = vmatpush1.msra.mxu0 %v278
    %318 = vmatprep.subr.mxu0 0.0
    %319 = vmatpush1.msra.mxu0 0.0
    %320 = vmatprep.subr.mxu0 0.0
    %321 = vmatpush1.msra.mxu0 0.0
    %322 = vmatprep.subr.mxu0 0.0
    %323 = vmatpush1.msra.mxu0 0.0
    %324 = vmatprep.subr.mxu0 0.0
    %325 = vmatpush1.msra.mxu0 0.0
    %326 = vmatprep.subr.mxu0 0.0
    %327 = vmatpush1.msra.mxu0 0.0
    %328 = vmatprep.subr.mxu0 0.0
    %329 = vmatpush1.msra.mxu0 0.0
    %330 = vmatprep.subr.mxu0 0.0
    %331 = vmatpush1.msra.mxu0 0.0
    %332 = vmatprep.subr.mxu0 0.0
    %333 = vmatpush1.msra.mxu0 0.0
    %334 = vmatprep.subr.mxu0 0.0
    %335 = vmatpush1.msra.mxu0 0.0
    %336 = vmatprep.subr.mxu0 0.0
    %337 = vmatpush1.msra.mxu0 0.0
    %338 = vmatprep.subr.mxu0 0.0
    %339 = vmatpush1.msra.mxu0 0.0
    %340 = vmatprep.subr.mxu0 0.0
    %341 = vmatpush1.msra.mxu0 0.0
    %342 = vmatprep.subr.mxu0 0.0
    %343 = vmatpush1.msra.mxu0 0.0
    %344 = vmatprep.subr.mxu0 0.0
    %345 = vmatpush1.msra.mxu0 0.0
    %346 = vmatprep.subr.mxu0 0.0
    %347 = vmatpush1.msra.mxu0 0.0
    %348 = vmatprep.subr.mxu0 0.0
    %349 = vmatpush1.msra.mxu0 0.0
    %350 = vmatprep.mubr.f32.mxu0 0.0
    %351 = vmatmul.mubr.f32.gmra.mrb[0].mxu0 %v262
    %v352 = vpop.f32.mrb[0].mxu0
    %v353 = vadd.f32 %v284, %v352
    %v354 = vpop.f32.mrb[0].mxu0
    %355 = vdwg.mxu0
    %v356 = vxor.u32 %v353, 2147483648
    %v357 = vmul.f32 %v356, 1.442695
    %v358 = vpow.pop %v357
    %v359 = vadd.f32 %v358, 1.0
    %v360 = vrcp.pop %v359
    %v361 = vmul.f32 1.0, %v360
    %362 = vst [vmem:[#allocation10] sm:$0xff] %v361
    // Predicated region
    $region46: #{decoder_forward.1} parent=1 // pred_check
      _
    $region47: #{decoder_forward.1} parent=1 // pred_check_branch
      %364 = sbr.rel (0) target = $region49
    $region48: #{decoder_forward.1} parent=1 // pred_region
      %s366 = ssub.s32 128, 128
      %367 = vsyncadd [#allocation4], %s366
      %s369 = sshll.u32 [#allocation10], 4
      %s370 = int_to_ptr.vmem [resolvable:$true] %s369
      %372 = dma.vmem_to_hbm [thread:$0]  %s370, 128, %s7, [#allocation4]
    $region49: #{decoder_forward.1} parent=1 // pred_fallthru
      _
    // Predicated region
    $region50: #{decoder_forward.1} parent=1 // pred_check
      _
    $region51: #{decoder_forward.1} parent=1 // pred_check_branch
      %374 = sbr.rel (0) target = $region53
    $region52: #{decoder_forward.1} parent=1 // pred_region
      %375 = dma.done [#allocation4], 128
    $region53: #{decoder_forward.1} parent=1 // pred_fallthru
      _
    %376 = vsyncpa [#allocation3], 1
    %377 = vsyncpa [#allocation6], 1
    %378 = vsyncpa [#allocation9], 1
    %379 = vsyncpa [#allocation4], 1

// kernel: decoder_forward.1
$region0: #{decoder_forward.1}
  #allocation0 [shape = 'u32[]', space=smem, size = 0x4, offset = 0x4, fixed_abs, tag = 'smem constant byte address 0x4 - core index']
  #allocation1 [shape = 'u32[144,128]{1,0:T(1,128)}', space=vmem, size = 0x12000, scoped, tag = 'internal scratch']
  %s0 = inlined_call_operand.hbm [shape: f32[8,16], index: 0, kind: input, shape index: {}]
  %s1 = inlined_call_operand.hbm [shape: f32[16,128], index: 1, kind: input, shape index: {}]
  %s2 = inlined_call_operand.vmem [shape: f32[1,128], index: 2, kind: input, shape index: {}]
  %s3 = inlined_call_operand.hbm [shape: f32[128,128], index: 3, kind: input, shape index: {}]
  %s4 = inlined_call_operand.vmem [shape: f32[1,128], index: 4, kind: input, shape index: {}]
  %s5 = inlined_call_operand.hbm [shape: f32[128,128], index: 5, kind: input, shape index: {}]
  %s6 = inlined_call_operand.vmem [shape: f32[1,128], index: 6, kind: input, shape index: {}]
  %s7 = inlined_call_operand.hbm [shape: f32[8,128], index: 7, kind: output, shape index: {}]
  %s8 = sld [smem:[#allocation0]]
  $region54: #{decoder_forward.1} parent=0
    _
  %s10 = ssub.s32 1, %s8
  %s11 = scalar_select 0, %s10, %s8
  $region1: #{decoder_forward.1} parent=0
    #allocation2 [shape = 'u8[4096]{0}', space=vmem, size = 0x1000, scoped, tag = 'input window, operand 0, single buffered']
    #allocation3 [shape = 's32[1]{0}', space=sflag, size = 0x4, scoped, tag = 'scoped memory for decoder_forward.1']
    #allocation4 [shape = 's32[1]{0}', space=sflag, size = 0x4, scoped, tag = 'scoped memory for decoder_forward.1']
    #allocation5 [shape = 'u8[8192]{0}', space=vmem, size = 0x2000, scoped, tag = 'input window, operand 1, single buffered']
    #allocation6 [shape = 's32[1]{0}', space=sflag, size = 0x4, scoped, tag = 'scoped memory for decoder_forward.1']
    #allocation7 [shape = 'u8[65536]{0}', space=vmem, size = 0x10000, scoped, tag = 'input window, operand 3, single buffered']
    #allocation8 [shape = 'u8[65536]{0}', space=vmem, size = 0x10000, scoped, tag = 'input window, operand 5, single buffered']
    #allocation9 [shape = 's32[1]{0}', space=sflag, size = 0x4, scoped, tag = 'scoped memory for decoder_forward.1']
    #allocation10 [shape = 'u8[4096]{0}', space=vmem, size = 0x1000, scoped, tag = 'output window, operand 0, single buffered']
    %12 = vsyncpa [#allocation3], 0
    %13 = vsyncpa [#allocation6], 0
    %14 = vsyncpa [#allocation9], 0
    %15 = vsyncpa [#allocation4], 0
    // Predicated region
    $region2: #{decoder_forward.1} parent=1 // pred_check
      _
    $region3: #{decoder_forward.1} parent=1 // pred_check_branch
      %17 = sbr.rel (0) target = $region5
    $region4: #{decoder_forward.1} parent=1 // pred_region
      %s19 = ssub.s32 128, 128
      %20 = vsyncadd [#allocation3], %s19
      %s22 = sshll.u32 [#allocation2], 4
      %s23 = int_to_ptr.vmem [resolvable:$true] %s22
      %25 = dma.hbm_to_vmem [thread:$0]  %s0, 128, %s23, [#allocation3]
    $region5: #{decoder_forward.1} parent=1 // pred_fallthru
      _
    // Predicated region
    $region6: #{decoder_forward.1} parent=1 // pred_check
      _
    $region7: #{decoder_forward.1} parent=1 // pred_check_branch
      %27 = sbr.rel (0) target = $region9
    $region8: #{decoder_forward.1} parent=1 // pred_region
      %s29 = ssub.s32 256, 256
      %30 = vsyncadd [#allocation6], %s29
      %s31 = sshll.u32 [#allocation5], 4
      %s32 = int_to_ptr.vmem [resolvable:$true] %s31
      %37 = dma.hbm_to_vmem [thread:$0]  %s1, 256, %s32, [#allocation6], 128, 128, 8
    $region9: #{decoder_forward.1} parent=1 // pred_fallthru
      _
    // Predicated region
    $region10: #{decoder_forward.1} parent=1 // pred_check
      _
    $region11: #{decoder_forward.1} parent=1 // pred_check_branch
      %39 = sbr.rel (0) target = $region13
    $region12: #{decoder_forward.1} parent=1 // pred_region
      _
    $region13: #{decoder_forward.1} parent=1 // pred_fallthru
      _
    // Predicated region
    $region14: #{decoder_forward.1} parent=1 // pred_check
      _
    $region15: #{decoder_forward.1} parent=1 // pred_check_branch
      %41 = sbr.rel (0) target = $region17
    $region16: #{decoder_forward.1} parent=1 // pred_region
      %s43 = ssub.s32 2048, 2048
      %44 = vsyncadd [#allocation6], %s43
      %s45 = sshll.u32 [#allocation7], 4
      %s46 = int_to_ptr.vmem [resolvable:$true] %s45
      %51 = dma.hbm_to_vmem [thread:$0]  %s3, 2048, %s46, [#allocation6], 128, 128, 8
    $region17: #{decoder_forward.1} parent=1 // pred_fallthru
      _
    // Predicated region
    $region18: #{decoder_forward.1} parent=1 // pred_check
      _
    $region19: #{decoder_forward.1} parent=1 // pred_check_branch
      %53 = sbr.rel (0) target = $region21
    $region20: #{decoder_forward.1} parent=1 // pred_region
      _
    $region21: #{decoder_forward.1} parent=1 // pred_fallthru
      _
    // Predicated region
    $region22: #{decoder_forward.1} parent=1 // pred_check
      _
    $region23: #{decoder_forward.1} parent=1 // pred_check_branch
      %55 = sbr.rel (0) target = $region25
    $region24: #{decoder_forward.1} parent=1 // pred_region
      %s57 = ssub.s32 2048, 2048
      %58 = vsyncadd [#allocation9], %s57
      %s59 = sshll.u32 [#allocation8], 4
      %s60 = int_to_ptr.vmem [resolvable:$true] %s59
      %65 = dma.hbm_to_vmem [thread:$0]  %s5, 2048, %s60, [#allocation9], 128, 128, 8
    $region25: #{decoder_forward.1} parent=1 // pred_fallthru
      _
    // Predicated region
    $region26: #{decoder_forward.1} parent=1 // pred_check
      _
    $region27: #{decoder_forward.1} parent=1 // pred_check_branch
      %67 = sbr.rel (0) target = $region29
    $region28: #{decoder_forward.1} parent=1 // pred_region
      _
    $region29: #{decoder_forward.1} parent=1 // pred_fallthru
      _
    // Predicated region
    $region30: #{decoder_forward.1} parent=1 // pred_check
      _
    $region31: #{decoder_forward.1} parent=1 // pred_check_branch
      %69 = sbr.rel (0) target = $region33
    $region32: #{decoder_forward.1} parent=1 // pred_region
      %70 = dma.done [#allocation3], 128
    $region33: #{decoder_forward.1} parent=1 // pred_fallthru
      _
    // Predicated region
    $region34: #{decoder_forward.1} parent=1 // pred_check
      _
    $region35: #{decoder_forward.1} parent=1 // pred_check_branch
      %72 = sbr.rel (0) target = $region37
    $region36: #{decoder_forward.1} parent=1 // pred_region
      %73 = dma.done [#allocation6], 256
    $region37: #{decoder_forward.1} parent=1 // pred_fallthru
      _
    // Predicated region
    $region38: #{decoder_forward.1} parent=1 // pred_check
      _
    $region39: #{decoder_forward.1} parent=1 // pred_check_branch
      %75 = sbr.rel (0) target = $region41
    $region40: #{decoder_forward.1} parent=1 // pred_region
      %76 = dma.done [#allocation6], 2048
    $region41: #{decoder_forward.1} parent=1 // pred_fallthru
      _
    // Predicated region
    $region42: #{decoder_forward.1} parent=1 // pred_check
      _
    $region43: #{decoder_forward.1} parent=1 // pred_check_branch
      %78 = sbr.rel (0) target = $region45
    $region44: #{decoder_forward.1} parent=1 // pred_region
      %79 = dma.done [#allocation9], 2048
    $region45: #{decoder_forward.1} parent=1 // pred_fallthru
      _
    %v80 = vld [vmem:[#allocation2] sm:$0xff]
    %v81 = vld [vmem:[#allocation5] sm:$0xff]
    %v82 = vld [vmem:[#allocation5 + $0x8] sm:$0xff]
    %v83 = vld [vmem:[%s2] sm:$0x1]
    %v85 = vlaneseq
    %v86 = vshrl.u32 %v85, 7
    %v87 = vsub.s32 0, %v86
    %v88 = vrot.slane %v83, %v87
    %vm90 = vcmask 130048
    %v92 = vsel %vm90, %v80, 0
    %94 = vmatprep.subr.mxu0 0.0
    %95 = vmatpush1.msra.mxu0 %v81
    %96 = vmatprep.subr.mxu0 0.0
    %97 = vmatpush1.msra.mxu0 %v82
    %98 = vmatprep.subr.mxu0 0.0
    %99 = vmatpush1.msra.mxu0 0.0
    %100 = vmatprep.subr.mxu0 0.0
    %101 = vmatpush1.msra.mxu0 0.0
    %102 = vmatprep.subr.mxu0 0.0
    %103 = vmatpush1.msra.mxu0 0.0
    %104 = vmatprep.subr.mxu0 0.0
    %105 = vmatpush1.msra.mxu0 0.0
    %106 = vmatprep.subr.mxu0 0.0
    %107 = vmatpush1.msra.mxu0 0.0
    %108 = vmatprep.subr.mxu0 0.0
    %109 = vmatpush1.msra.mxu0 0.0
    %110 = vmatprep.subr.mxu0 0.0
    %111 = vmatpush1.msra.mxu0 0.0
    %112 = vmatprep.subr.mxu0 0.0
    %113 = vmatpush1.msra.mxu0 0.0
    %114 = vmatprep.subr.mxu0 0.0
    %115 = vmatpush1.msra.mxu0 0.0
    %116 = vmatprep.subr.mxu0 0.0
    %117 = vmatpush1.msra.mxu0 0.0
    %118 = vmatprep.subr.mxu0 0.0
    %119 = vmatpush1.msra.mxu0 0.0
    %120 = vmatprep.subr.mxu0 0.0
    %121 = vmatpush1.msra.mxu0 0.0
    %122 = vmatprep.subr.mxu0 0.0
    %123 = vmatpush1.msra.mxu0 0.0
    %124 = vmatprep.subr.mxu0 0.0
    %125 = vmatpush1.msra.mxu0 0.0
    %126 = vmatprep.subr.mxu0 0.0
    %127 = vmatpush1.msra.mxu0 0.0
    %128 = vmatprep.subr.mxu0 0.0
    %129 = vmatpush1.msra.mxu0 0.0
    %130 = vmatprep.subr.mxu0 0.0
    %131 = vmatpush1.msra.mxu0 0.0
    %132 = vmatprep.subr.mxu0 0.0
    %133 = vmatpush1.msra.mxu0 0.0
    %134 = vmatprep.subr.mxu0 0.0
    %135 = vmatpush1.msra.mxu0 0.0
    %136 = vmatprep.subr.mxu0 0.0
    %137 = vmatpush1.msra.mxu0 0.0
    %138 = vmatprep.subr.mxu0 0.0
    %139 = vmatpush1.msra.mxu0 0.0
    %140 = vmatprep.subr.mxu0 0.0
    %141 = vmatpush1.msra.mxu0 0.0
    %142 = vmatprep.subr.mxu0 0.0
    %143 = vmatpush1.msra.mxu0 0.0
    %144 = vmatprep.subr.mxu0 0.0
    %145 = vmatpush1.msra.mxu0 0.0
    %146 = vmatprep.subr.mxu0 0.0
    %147 = vmatpush1.msra.mxu0 0.0
    %148 = vmatprep.subr.mxu0 0.0
    %149 = vmatpush1.msra.mxu0 0.0
    %150 = vmatprep.subr.mxu0 0.0
    %151 = vmatpush1.msra.mxu0 0.0
    %152 = vmatprep.subr.mxu0 0.0
    %153 = vmatpush1.msra.mxu0 0.0
    %154 = vmatprep.subr.mxu0 0.0
    %155 = vmatpush1.msra.mxu0 0.0
    %156 = vmatprep.subr.mxu0 0.0
    %157 = vmatpush1.msra.mxu0 0.0
    %158 = vmatprep.mubr.f32.mxu0 0.0
    %159 = vmatmul.mubr.f32.gmra.mrb[0].mxu0 %v92
    %v160 = vpop.f32.mrb[0].mxu0
    %v161 = vadd.f32 %v88, %v160
    %v162 = vpop.f32.mrb[0].mxu0
    %163 = vdwg.mxu0
    %vm164 = vcmp.gt.f32.partialorder %v161, 0.0
    %v165 = vmul.f32 %v161, 0.2
    %v166 = vsel %vm164, %v161, %v165
    %v167 = vld [vmem:[#allocation7] sm:$0xff]
    %v168 = vld [vmem:[#allocation7 + $0x8] sm:$0xff]
    %v169 = vld [vmem:[#allocation7 + $0x10] sm:$0xff]
    %v170 = vld [vmem:[#allocation7 + $0x18] sm:$0xff]
    %v171 = vld [vmem:[#allocation7 + $0x20] sm:$0xff]
    %v172 = vld [vmem:[#allocation7 + $0x28] sm:$0xff]
    %v173 = vld [vmem:[#allocation7 + $0x30] sm:$0xff]
    %v174 = vld [vmem:[#allocation7 + $0x38] sm:$0xff]
    %v175 = vld [vmem:[#allocation7 + $0x40] sm:$0xff]
    %v176 = vld [vmem:[#allocation7 + $0x48] sm:$0xff]
    %v177 = vld [vmem:[#allocation7 + $0x50] sm:$0xff]
    %v178 = vld [vmem:[#allocation7 + $0x58] sm:$0xff]
    %v179 = vld [vmem:[#allocation7 + $0x60] sm:$0xff]
    %v180 = vld [vmem:[#allocation7 + $0x68] sm:$0xff]
    %v181 = vld [vmem:[#allocation7 + $0x70] sm:$0xff]
    %v182 = vld [vmem:[#allocation7 + $0x78] sm:$0xff]
    %v183 = vld [vmem:[%s4] sm:$0x1]
    %v185 = vlaneseq
    %v186 = vshrl.u32 %v185, 7
    %v187 = vsub.s32 0, %v186
    %v188 = vrot.slane %v183, %v187
    %190 = vmatprep.subr.mxu0 0.0
    %191 = vmatpush1.msra.mxu0 %v167
    %192 = vmatprep.subr.mxu0 0.0
    %193 = vmatpush1.msra.mxu0 %v168
    %194 = vmatprep.subr.mxu0 0.0
    %195 = vmatpush1.msra.mxu0 %v169
    %196 = vmatprep.subr.mxu0 0.0
    %197 = vmatpush1.msra.mxu0 %v170
    %198 = vmatprep.subr.mxu0 0.0
    %199 = vmatpush1.msra.mxu0 %v171
    %200 = vmatprep.subr.mxu0 0.0
    %201 = vmatpush1.msra.mxu0 %v172
    %202 = vmatprep.subr.mxu0 0.0
    %203 = vmatpush1.msra.mxu0 %v173
    %204 = vmatprep.subr.mxu0 0.0
    %205 = vmatpush1.msra.mxu0 %v174
    %206 = vmatprep.subr.mxu0 0.0
    %207 = vmatpush1.msra.mxu0 %v175
    %208 = vmatprep.subr.mxu0 0.0
    %209 = vmatpush1.msra.mxu0 %v176
    %210 = vmatprep.subr.mxu0 0.0
    %211 = vmatpush1.msra.mxu0 %v177
    %212 = vmatprep.subr.mxu0 0.0
    %213 = vmatpush1.msra.mxu0 %v178
    %214 = vmatprep.subr.mxu0 0.0
    %215 = vmatpush1.msra.mxu0 %v179
    %216 = vmatprep.subr.mxu0 0.0
    %217 = vmatpush1.msra.mxu0 %v180
    %218 = vmatprep.subr.mxu0 0.0
    %219 = vmatpush1.msra.mxu0 %v181
    %220 = vmatprep.subr.mxu0 0.0
    %221 = vmatpush1.msra.mxu0 %v182
    %222 = vmatprep.subr.mxu0 0.0
    %223 = vmatpush1.msra.mxu0 0.0
    %224 = vmatprep.subr.mxu0 0.0
    %225 = vmatpush1.msra.mxu0 0.0
    %226 = vmatprep.subr.mxu0 0.0
    %227 = vmatpush1.msra.mxu0 0.0
    %228 = vmatprep.subr.mxu0 0.0
    %229 = vmatpush1.msra.mxu0 0.0
    %230 = vmatprep.subr.mxu0 0.0
    %231 = vmatpush1.msra.mxu0 0.0
    %232 = vmatprep.subr.mxu0 0.0
    %233 = vmatpush1.msra.mxu0 0.0
    %234 = vmatprep.subr.mxu0 0.0
    %235 = vmatpush1.msra.mxu0 0.0
    %236 = vmatprep.subr.mxu0 0.0
    %237 = vmatpush1.msra.mxu0 0.0
    %238 = vmatprep.subr.mxu0 0.0
    %239 = vmatpush1.msra.mxu0 0.0
    %240 = vmatprep.subr.mxu0 0.0
    %241 = vmatpush1.msra.mxu0 0.0
    %242 = vmatprep.subr.mxu0 0.0
    %243 = vmatpush1.msra.mxu0 0.0
    %244 = vmatprep.subr.mxu0 0.0
    %245 = vmatpush1.msra.mxu0 0.0
    %246 = vmatprep.subr.mxu0 0.0
    %247 = vmatpush1.msra.mxu0 0.0
    %248 = vmatprep.subr.mxu0 0.0
    %249 = vmatpush1.msra.mxu0 0.0
    %250 = vmatprep.subr.mxu0 0.0
    %251 = vmatpush1.msra.mxu0 0.0
    %252 = vmatprep.subr.mxu0 0.0
    %253 = vmatpush1.msra.mxu0 0.0
    %254 = vmatprep.mubr.f32.mxu0 0.0
    %255 = vmatmul.mubr.f32.gmra.mrb[0].mxu0 %v166
    %v256 = vpop.f32.mrb[0].mxu0
    %v257 = vadd.f32 %v188, %v256
    %v258 = vpop.f32.mrb[0].mxu0
    %259 = vdwg.mxu0
    %vm260 = vcmp.gt.f32.partialorder %v257, 0.0
    %v261 = vmul.f32 %v257, 0.2
    %v262 = vsel %vm260, %v257, %v261
    %v263 = vld [vmem:[#allocation8] sm:$0xff]
    %v264 = vld [vmem:[#allocation8 + $0x8] sm:$0xff]
    %v265 = vld [vmem:[#allocation8 + $0x10] sm:$0xff]
    %v266 = vld [vmem:[#allocation8 + $0x18] sm:$0xff]
    %v267 = vld [vmem:[#allocation8 + $0x20] sm:$0xff]
    %v268 = vld [vmem:[#allocation8 + $0x28] sm:$0xff]
    %v269 = vld [vmem:[#allocation8 + $0x30] sm:$0xff]
    %v270 = vld [vmem:[#allocation8 + $0x38] sm:$0xff]
    %v271 = vld [vmem:[#allocation8 + $0x40] sm:$0xff]
    %v272 = vld [vmem:[#allocation8 + $0x48] sm:$0xff]
    %v273 = vld [vmem:[#allocation8 + $0x50] sm:$0xff]
    %v274 = vld [vmem:[#allocation8 + $0x58] sm:$0xff]
    %v275 = vld [vmem:[#allocation8 + $0x60] sm:$0xff]
    %v276 = vld [vmem:[#allocation8 + $0x68] sm:$0xff]
    %v277 = vld [vmem:[#allocation8 + $0x70] sm:$0xff]
    %v278 = vld [vmem:[#allocation8 + $0x78] sm:$0xff]
    %v279 = vld [vmem:[%s6] sm:$0x1]
    %v281 = vlaneseq
    %v282 = vshrl.u32 %v281, 7
    %v283 = vsub.s32 0, %v282
    %v284 = vrot.slane %v279, %v283
    %286 = vmatprep.subr.mxu0 0.0
    %287 = vmatpush1.msra.mxu0 %v263
    %288 = vmatprep.subr.mxu0 0.0
    %289 = vmatpush1.msra.mxu0 %v264
    %290 = vmatprep.subr.mxu0 0.0
    %291 = vmatpush1.msra.mxu0 %v265
    %292 = vmatprep.subr.mxu0 0.0
    %293 = vmatpush1.msra.mxu0 %v266
    %294 = vmatprep.subr.mxu0 0.0
    %295 = vmatpush1.msra.mxu0 %v267
    %296 = vmatprep.subr.mxu0 0.0
    %297 = vmatpush1.msra.mxu0 %v268
    %298 = vmatprep.subr.mxu0 0.0
    %299 = vmatpush1.msra.mxu0 %v269
    %300 = vmatprep.subr.mxu0 0.0
    %301 = vmatpush1.msra.mxu0 %v270
    %302 = vmatprep.subr.mxu0 0.0
    %303 = vmatpush1.msra.mxu0 %v271
    %304 = vmatprep.subr.mxu0 0.0
    %305 = vmatpush1.msra.mxu0 %v272
    %306 = vmatprep.subr.mxu0 0.0
    %307 = vmatpush1.msra.mxu0 %v273
    %308 = vmatprep.subr.mxu0 0.0
    %309 = vmatpush1.msra.mxu0 %v274
    %310 = vmatprep.subr.mxu0 0.0
    %311 = vmatpush1.msra.mxu0 %v275
    %312 = vmatprep.subr.mxu0 0.0
    %313 = vmatpush1.msra.mxu0 %v276
    %314 = vmatprep.subr.mxu0 0.0
    %315 = vmatpush1.msra.mxu0 %v277
    %316 = vmatprep.subr.mxu0 0.0
    %317 = vmatpush1.msra.mxu0 %v278
    %318 = vmatprep.subr.mxu0 0.0
    %319 = vmatpush1.msra.mxu0 0.0
    %320 = vmatprep.subr.mxu0 0.0
    %321 = vmatpush1.msra.mxu0 0.0
    %322 = vmatprep.subr.mxu0 0.0
    %323 = vmatpush1.msra.mxu0 0.0
    %324 = vmatprep.subr.mxu0 0.0
    %325 = vmatpush1.msra.mxu0 0.0
    %326 = vmatprep.subr.mxu0 0.0
    %327 = vmatpush1.msra.mxu0 0.0
    %328 = vmatprep.subr.mxu0 0.0
    %329 = vmatpush1.msra.mxu0 0.0
    %330 = vmatprep.subr.mxu0 0.0
    %331 = vmatpush1.msra.mxu0 0.0
    %332 = vmatprep.subr.mxu0 0.0
    %333 = vmatpush1.msra.mxu0 0.0
    %334 = vmatprep.subr.mxu0 0.0
    %335 = vmatpush1.msra.mxu0 0.0
    %336 = vmatprep.subr.mxu0 0.0
    %337 = vmatpush1.msra.mxu0 0.0
    %338 = vmatprep.subr.mxu0 0.0
    %339 = vmatpush1.msra.mxu0 0.0
    %340 = vmatprep.subr.mxu0 0.0
    %341 = vmatpush1.msra.mxu0 0.0
    %342 = vmatprep.subr.mxu0 0.0
    %343 = vmatpush1.msra.mxu0 0.0
    %344 = vmatprep.subr.mxu0 0.0
    %345 = vmatpush1.msra.mxu0 0.0
    %346 = vmatprep.subr.mxu0 0.0
    %347 = vmatpush1.msra.mxu0 0.0
    %348 = vmatprep.subr.mxu0 0.0
    %349 = vmatpush1.msra.mxu0 0.0
    %350 = vmatprep.mubr.f32.mxu0 0.0
    %351 = vmatmul.mubr.f32.gmra.mrb[0].mxu0 %v262
    %v352 = vpop.f32.mrb[0].mxu0
    %v353 = vadd.f32 %v284, %v352
    %v354 = vpop.f32.mrb[0].mxu0
    %355 = vdwg.mxu0
    %v356 = vxor.u32 %v353, 2147483648
    %v357 = vmul.f32 %v356, 1.442695
    %v358 = vpow.pop %v357
    %v359 = vadd.f32 %v358, 1.0
    %v360 = vrcp.pop %v359
    %v361 = vmul.f32 1.0, %v360
    %362 = vst [vmem:[#allocation10] sm:$0xff] %v361
    // Predicated region
    $region46: #{decoder_forward.1} parent=1 // pred_check
      _
    $region47: #{decoder_forward.1} parent=1 // pred_check_branch
      %364 = sbr.rel (0) target = $region49
    $region48: #{decoder_forward.1} parent=1 // pred_region
      %s366 = ssub.s32 128, 128
      %367 = vsyncadd [#allocation4], %s366
      %s369 = sshll.u32 [#allocation10], 4
      %s370 = int_to_ptr.vmem [resolvable:$true] %s369
      %372 = dma.vmem_to_hbm [thread:$0]  %s370, 128, %s7, [#allocation4]
    $region49: #{decoder_forward.1} parent=1 // pred_fallthru
      _
    // Predicated region
    $region50: #{decoder_forward.1} parent=1 // pred_check
      _
    $region51: #{decoder_forward.1} parent=1 // pred_check_branch
      %374 = sbr.rel (0) target = $region53
    $region52: #{decoder_forward.1} parent=1 // pred_region
      %375 = dma.done [#allocation4], 128
    $region53: #{decoder_forward.1} parent=1 // pred_fallthru
      _
    %376 = vsyncpa [#allocation3], 1
    %377 = vsyncpa [#allocation6], 1
    %378 = vsyncpa [#allocation9], 1
    %379 = vsyncpa [#allocation4], 1

</llo_original>
